<compile_context>
chip_gen: v7x
topology: tpu7x:2x2x1
jax: 0.10.0
libtpu: 0.0.40
codegen_flags: <defaults>
</compile_context>

<pallas_src>
import jax
import jax.numpy as jnp
from jax.experimental import pallas as pl
from jax.experimental.pallas import tpu as pltpu


def _bias_add_kernel(x_ref, b_ref, o_ref):
    # x_ref / o_ref: (tr, tc) VMEM tile.
    # b_ref: (R_pad, 1) fully-resident per-row bias column (loaded once).
    tr = x_ref.shape[0]                      # static Python int at trace time
    start = pl.program_id(0) * tr
    if tr % 8 == 0:                          # aligned sublane slice hint
        start = pl.multiple_of(start, 8)
    b = b_ref[pl.ds(start, tr), :]           # (tr, 1) -> lane broadcast on VPU
    o_ref[...] = x_ref[...] + b


def _round_down(x: int, m: int) -> int:
    return (x // m) * m


def _default_block_bytes() -> int:
    """Chip-aware per-buffer block budget (bytes)."""
    try:
        kind = jax.devices()[0].device_kind.lower()
    except Exception:
        return 4 * 1024 * 1024
    if "v7" in kind or "7x" in kind:
        return 8 * 1024 * 1024               # v7x: 3.2 TB/s HBM, hide step overhead
    if "v6" in kind:
        return 4 * 1024 * 1024               # v6e: ~roofline knee
    if "v5" in kind:
        return 3 * 1024 * 1024               # v5e: 16 MiB default scoped VMEM
    return 4 * 1024 * 1024


def bias_add(x_nchw: jax.Array, bias: jax.Array, *, target_block_bytes: int | None = None) -> jax.Array:
    """x_nchw: (N, C, H, W); bias: (C,). Returns x + bias broadcast over C (NCHW)."""
    N, C, H, W = x_nchw.shape
    R = N * C
    L = H * W

    if target_block_bytes is None:
        target_block_bytes = _default_block_bytes()

    # Free, zero-data-movement view (row-major): rows are (n, c) pairs.
    x2d = x_nchw.reshape(R, L)
    dtype = x2d.dtype
    itemsize = jnp.dtype(dtype).itemsize
    sub = {4: 8, 2: 16, 1: 32}.get(itemsize, 8)   # packed sublane multiple per dtype

    # ---- column (lane) tile -------------------------------------------------
    # Full width if one `sub`-row slab fits the budget; otherwise tile the lane
    # axis in multiples of 128 (ragged last block handled by cdiv + masking).
    if L * sub * itemsize <= target_block_bytes:
        tc = L                                # full last dim always satisfies (8,128)
    else:
        tc = max(128, _round_down(target_block_bytes // (sub * itemsize), 128))
        tc = min(tc, L)

    # ---- row (sublane) tile ------------------------------------------------
    if R <= sub:
        tr = R                                # full dim satisfies the (8,128) rule
    else:
        rows = max(sub, target_block_bytes // (tc * itemsize))
        tr = max(sub, _round_down(rows, sub))
        tr = min(tr, _round_down(R, sub))
        # Megacore (v7x): keep >= 2 steps on the leading parallel axis so both
        # TensorCores get work.
        if R >= 2 * sub:
            tr = min(tr, max(sub, _round_down(R // 2, sub)))

    grid = (pl.cdiv(R, tr), pl.cdiv(L, tc))

    # Per-row bias column, padded to a whole number of row blocks so the
    # in-kernel pl.ds slice never reads past the buffer.  Tiny (a few KiB).
    R_pad = grid[0] * tr
    b_col = jnp.broadcast_to(bias.astype(dtype)[None, :], (N, C)).reshape(R, 1)
    if R_pad != R:
        b_col = jnp.pad(b_col, ((0, R_pad - R), (0, 0)))

    block_bytes = tr * tc * itemsize
    # Double-buffered x + out (~4x block) + bias + slack; <= 48 MiB is safe on
    # every generation (v7x has 64 MiB physical; v5e/v6e have 128 MiB).
    vmem_limit = min(48 * 1024 * 1024,
                     max(32 * 1024 * 1024, 4 * block_bytes + 4 * 1024 * 1024))

    out2d = pl.pallas_call(
        _bias_add_kernel,
        out_shape=jax.ShapeDtypeStruct((R, L), dtype),
        grid=grid,
        in_specs=[
            pl.BlockSpec((tr, tc), lambda i, j: (i, j)),     # x tile
            pl.BlockSpec((R_pad, 1), lambda i, j: (0, 0)),   # resident bias column
        ],
        out_specs=pl.BlockSpec((tr, tc), lambda i, j: (i, j)),
        compiler_params=pltpu.CompilerParams(
            dimension_semantics=("parallel", "parallel"),
            vmem_limit_bytes=vmem_limit,
        ),
        cost_estimate=pl.CostEstimate(
            flops=R * L,
            transcendentals=0,
            bytes_accessed=2 * R * L * itemsize + R_pad * itemsize,
        ),
    )(x2d, b_col)

    # Free view back to NCHW (no data movement).
    return out2d.reshape(N, C, H, W)


if __name__ == "__main__":
    key = jax.random.PRNGKey(0)
    N, C, H, W = 2, 4, 16, 16
    kx, kb = jax.random.split(key)
    x = jax.random.normal(kx, (N, C, H, W), dtype=jnp.float32)
    # The module registers bias as zeros; use a non-trivial deterministic bias
    # so the add is actually exercised (zeros would also be correct).
    bias = jax.random.normal(kb, (C,), dtype=jnp.float32)

    out = jax.block_until_ready(bias_add(x, bias))

    ref = x + bias.reshape(1, C, 1, 1)
    assert out.shape == (N, C, H, W)
    assert out.dtype == x.dtype
    assert jnp.allclose(out, ref, atol=1e-6, rtol=1e-6), "mismatch vs reference"

    print("KERNEL_OK")
</pallas_src>

<mosaic_0001>
module attributes {stable_mosaic.version = 11 : i64} {
  func.func @_bias_add_kernel(%arg0: i32, %arg1: i32, %arg2: memref<8x256xf32, #tpu.memory_space<vmem>>, %arg3: memref<8x1xf32, #tpu.memory_space<vmem>>, %arg4: memref<8x256xf32, #tpu.memory_space<vmem>>) attributes {dimension_semantics = [#tpu.dimension_semantics<parallel>, #tpu.dimension_semantics<parallel>], iteration_bounds = array<i64: 1, 1>, scalar_prefetch = 0 : i64, scratch_operands = 0 : i64, tpu.core_type = #tpu.core_type<tc>, window_params = [{transform_indices = @transform_0, window_bounds = array<i64: 8, 256>}, {pipeline_mode = #tpu.pipeline_mode<synchronous>, transform_indices = @transform_1, window_bounds = array<i64: 8, 1>}, {transform_indices = @transform_2, window_bounds = array<i64: 8, 256>}]} {
    %c8_i32 = arith.constant 8 : i32
    %0 = arith.muli %arg0, %c8_i32 : i32
    %1 = tpu.assume_multiple %0, 8 : i32
    %2 = arith.index_cast %1 : i32 to index
    %c0 = arith.constant 0 : index
    %3 = vector.load %arg3[%2, %c0] : memref<8x1xf32, #tpu.memory_space<vmem>>, vector<8x1xf32>
    %c0_0 = arith.constant 0 : index
    %c0_1 = arith.constant 0 : index
    %4 = vector.load %arg2[%c0_0, %c0_1] : memref<8x256xf32, #tpu.memory_space<vmem>>, vector<8x256xf32>
    %5 = vector.broadcast %3 : vector<8x1xf32> to vector<8x256xf32>
    %6 = arith.addf %4, %5 : vector<8x256xf32>
    %c0_2 = arith.constant 0 : index
    %c0_3 = arith.constant 0 : index
    %7 = vector.load %arg4[%c0_2, %c0_3] : memref<8x256xf32, #tpu.memory_space<vmem>>, vector<8x256xf32>
    tpu.vector_store %arg4[%c0_2, %c0_3], %6 {strides = array<i32>} : memref<8x256xf32, #tpu.memory_space<vmem>>, vector<8x256xf32>,
    return
  }
  func.func @transform_0(%arg0: i32, %arg1: i32) -> (i32, i32) {
    %c0_i32 = arith.constant 0 : i32
    return %arg0, %arg1 : i32, i32
  }
  func.func @transform_1(%arg0: i32, %arg1: i32) -> (i32, i32) {
    %c0_i32 = arith.constant 0 : i32
    %c0_i32_0 = arith.constant 0 : i32
    %c0_i32_1 = arith.constant 0 : i32
    return %c0_i32, %c0_i32_0 : i32, i32
  }
  func.func @transform_2(%arg0: i32, %arg1: i32) -> (i32, i32) {
    %c0_i32 = arith.constant 0 : i32
    return %arg0, %arg1 : i32, i32
  }
}

</mosaic_0001>

<llo_original>
// kernel: tpu_custom_call.1
$region0: #{tpu_custom_call.1}
  #allocation0 [shape = 'u32[]', space=smem, size = 0x4, offset = 0x4, fixed_abs, tag = 'smem constant byte address 0x4 - core index']
  #allocation1 [shape = 'u32[144,128]{1,0:T(1,128)}', space=vmem, size = 0x12000, scoped, tag = 'internal scratch']
  %s0 = inlined_call_operand.hbm [shape: f32[8,256], index: 0, kind: input, shape index: {}]
  %s1 = inlined_call_operand.vmem [shape: f32[8,1], index: 1, kind: input, shape index: {}]
  %s2 = inlined_call_operand.hbm [shape: f32[8,256], index: 2, kind: output, shape index: {}]
  %s3 = sld [smem:[#allocation0]]
  $region22: #{tpu_custom_call.1} parent=0
    _
  %s5 = ssub.s32 1, %s3
  %s6 = scalar_select 0, %s5, %s3
  $region1: #{tpu_custom_call.1} parent=0
    #allocation2 [shape = 'u8[8192]{0}', space=vmem, size = 0x2000, scoped, tag = 'input window, operand 0, single buffered']
    #allocation3 [shape = 's32[1]{0}', space=sflag, size = 0x4, scoped, tag = 'scoped memory for tpu_custom_call.1']
    #allocation4 [shape = 's32[1]{0}', space=sflag, size = 0x4, scoped, tag = 'scoped memory for tpu_custom_call.1']
    #allocation5 [shape = 'u8[8192]{0}', space=vmem, size = 0x2000, scoped, tag = 'output window, operand 0, single buffered']
    %7 = vsyncpa [#allocation3], 0
    %8 = vsyncpa [#allocation4], 0
    // Predicated region
    $region2: #{tpu_custom_call.1} parent=1 // pred_check
      _
    $region3: #{tpu_custom_call.1} parent=1 // pred_check_branch
      %10 = sbr.rel (0) target = $region5
    $region4: #{tpu_custom_call.1} parent=1 // pred_region
      %s12 = ssub.s32 256, 256
      %13 = vsyncadd [#allocation3], %s12
      %s15 = sshll.u32 [#allocation2], 4
      %s16 = int_to_ptr.vmem [resolvable:$true] %s15
      %18 = dma.hbm_to_vmem [thread:$0]  %s0, 256, %s16, [#allocation3]
    $region5: #{tpu_custom_call.1} parent=1 // pred_fallthru
      _
    // Predicated region
    $region6: #{tpu_custom_call.1} parent=1 // pred_check
      _
    $region7: #{tpu_custom_call.1} parent=1 // pred_check_branch
      %20 = sbr.rel (0) target = $region9
    $region8: #{tpu_custom_call.1} parent=1 // pred_region
      _
    $region9: #{tpu_custom_call.1} parent=1 // pred_fallthru
      _
    // Predicated region
    $region10: #{tpu_custom_call.1} parent=1 // pred_check
      _
    $region11: #{tpu_custom_call.1} parent=1 // pred_check_branch
      %22 = sbr.rel (0) target = $region13
    $region12: #{tpu_custom_call.1} parent=1 // pred_region
      %23 = dma.done [#allocation3], 256
    $region13: #{tpu_custom_call.1} parent=1 // pred_fallthru
      _
    %s24 = smul.u32 0, 8
    %s25 = scalar_lea.vmem %s1, %s24
    %v26 = vld [vmem:[%s25] sm:$0xff]
    %v27 = vld [vmem:[#allocation2] sm:$0xff]
    %v28 = vld [vmem:[#allocation2 + $0x8] sm:$0xff]
    %30 = vset.pattern.permute.xlu0 0
    %31 = vperm.xlu0 %30, %v26
    %v32 = vpop.permute.xlu0 %31
    %v34 = vadd.f32 %v27, %v32
    %v35 = vadd.f32 %v28, %v32
    %36 = vst [vmem:[#allocation5] sm:$0xff] %v34
    %37 = vst [vmem:[#allocation5 + $0x8] sm:$0xff] %v35
    // Predicated region
    $region14: #{tpu_custom_call.1} parent=1 // pred_check
      _
    $region15: #{tpu_custom_call.1} parent=1 // pred_check_branch
      %39 = sbr.rel (0) target = $region17
    $region16: #{tpu_custom_call.1} parent=1 // pred_region
      %s41 = ssub.s32 256, 256
      %42 = vsyncadd [#allocation4], %s41
      %s44 = sshll.u32 [#allocation5], 4
      %s45 = int_to_ptr.vmem [resolvable:$true] %s44
      %47 = dma.vmem_to_hbm [thread:$0]  %s45, 256, %s2, [#allocation4]
    $region17: #{tpu_custom_call.1} parent=1 // pred_fallthru
      _
    // Predicated region
    $region18: #{tpu_custom_call.1} parent=1 // pred_check
      _
    $region19: #{tpu_custom_call.1} parent=1 // pred_check_branch
      %49 = sbr.rel (0) target = $region21
    $region20: #{tpu_custom_call.1} parent=1 // pred_region
      %50 = dma.done [#allocation4], 256
    $region21: #{tpu_custom_call.1} parent=1 // pred_fallthru
      _
    %51 = vsyncpa [#allocation3], 1
    %52 = vsyncpa [#allocation4], 1

</llo_original>
